<compile_context>
chip_gen: v5e
topology: v5e:2x2
jax: 0.10.0
libtpu: 0.0.40
codegen_flags: <defaults>
</compile_context>

<pallas_src>
import math

import jax
import jax.numpy as jnp
from jax.experimental import pallas as pl
from jax.experimental.pallas import tpu as pltpu


def _round_up(x, m):
    return (x + m - 1) // m * m


def _rowmask_kernel(x_ref, m_ref, o_ref):
    """One word per kernel row: (block_rows, 1) mask broadcasts across lanes."""
    o_ref[...] = x_ref[...] * m_ref[...]


def _packed_kernel(x_ref, m_ref, oh_ref, o_ref):
    """g words packed per lane-dense kernel row.

    Expand the (block_rows, g_pad) per-word keep mask across each word's H-wide
    lane segment with a small one-hot matmul on the MXU (idle otherwise), then
    one VPU multiply.  All values are exactly 0/1 so the math is exact.
    """
    m_exp = jnp.dot(m_ref[...], oh_ref[...], preferred_element_type=jnp.float32)
    o_ref[...] = x_ref[...] * m_exp.astype(x_ref.dtype)


def _pick_blocks(R, W, itemsize, sub, block_bytes):
    """Choose (block_w, block_rows) against a per-buffer VMEM budget."""
    if W % 128 == 0:
        max_w = max(128, (block_bytes // (sub * itemsize)) // 128 * 128)
        block_w = min(W, max_w)
    else:
        block_w = W  # odd width fallback: full row (masked lanes)
    br = max(sub, (block_bytes // (block_w * itemsize)) // sub * sub)
    block_rows = R if R < sub else min(R, br)
    # Ensure >= 2 grid blocks when possible so both v7x TensorCores get work
    # (both grid axes are "parallel"); neutral on single-core v5e/v6e.
    if pl.cdiv(R, block_rows) * pl.cdiv(W, block_w) < 2 and R >= 2 * sub:
        block_rows = min(block_rows, _round_up(pl.cdiv(R, 2), sub))
    return block_w, block_rows


def _compiler_params():
    return pltpu.CompilerParams(
        dimension_semantics=("parallel", "parallel"),
        vmem_limit_bytes=32 * 1024 * 1024,
    )


def word_dropout(x, key, p=0.05, training=True, *, block_bytes=4 * 1024 * 1024):
    """Pallas WordDropout. x: (B, T, H). Returns same shape/dtype as x."""
    if not training or p == 0.0:
        return x

    B, T, H = x.shape
    words = B * T
    dtype = x.dtype
    itemsize = jnp.dtype(dtype).itemsize
    sub = max(8, 32 // itemsize)  # dtype sublane multiple (8 f32 / 16 bf16)

    # Bernoulli(1 - p) keep mask, one value per (b, t) word -- same semantics
    # as x.data.new(B, T, 1).bernoulli_(1 - p) in the PyTorch module.
    keep = jax.random.bernoulli(key, 1.0 - float(p), (words,)).astype(dtype)
    x2d = x.reshape(words, H)

    # Lane-dense packing factor: fold g consecutive words into one kernel row
    # so the row width g*H is a multiple of 128 lanes (full-width unmasked
    # stores).  The mask expansion runs on the MXU, so g can be fairly large;
    # it is bounded mainly by the one-hot matrix size.
    g = 1
    if H % 128 != 0 and jnp.issubdtype(dtype, jnp.floating):
        cand = 128 // math.gcd(H, 128)
        onehot_bytes = _round_up(cand, sub) * cand * H * itemsize
        if (cand <= 64 and cand * H <= 65536
                and onehot_bytes <= 4 * 1024 * 1024
                and words // cand >= sub):
            g = cand

    if g == 1:
        R, W = words, H
        m2 = keep.reshape(R, 1)
        block_w, block_rows = _pick_blocks(R, W, itemsize, sub, block_bytes)
        grid = (pl.cdiv(R, block_rows), pl.cdiv(W, block_w))
        out = pl.pallas_call(
            _rowmask_kernel,
            out_shape=jax.ShapeDtypeStruct((R, W), dtype),
            grid_spec=pltpu.PrefetchScalarGridSpec(
                num_scalar_prefetch=0,
                grid=grid,
                in_specs=[
                    pl.BlockSpec((block_rows, block_w), lambda i, j: (i, j)),
                    pl.BlockSpec((block_rows, 1), lambda i, j: (i, 0)),
                ],
                out_specs=pl.BlockSpec((block_rows, block_w), lambda i, j: (i, j)),
            ),
            compiler_params=_compiler_params(),
        )(x2d, m2)
        return out.reshape(B, T, H)

    # ---- packed (g > 1) path ------------------------------------------------
    main_words = (words // g) * g
    rem = words - main_words
    R = main_words // g
    W = g * H
    g_pad = _round_up(g, sub)

    x_main = (x2d if rem == 0 else x2d[:main_words]).reshape(R, W)
    m_main = (keep if rem == 0 else keep[:main_words]).reshape(R, g)
    if g_pad > g:
        m_main = jnp.pad(m_main, ((0, 0), (0, g_pad - g)))

    # (g_pad, W) one-hot expansion matrix: row s is 1 over word s's lane range.
    col_word = jnp.arange(W, dtype=jnp.int32) // H
    onehot = (col_word[None, :] ==
              jnp.arange(g_pad, dtype=jnp.int32)[:, None]).astype(dtype)

    block_w, block_rows = _pick_blocks(R, W, itemsize, sub, block_bytes)
    grid = (pl.cdiv(R, block_rows), pl.cdiv(W, block_w))
    out_main = pl.pallas_call(
        _packed_kernel,
        out_shape=jax.ShapeDtypeStruct((R, W), dtype),
        grid_spec=pltpu.PrefetchScalarGridSpec(
            num_scalar_prefetch=0,
            grid=grid,
            in_specs=[
                pl.BlockSpec((block_rows, block_w), lambda i, j: (i, j)),
                pl.BlockSpec((block_rows, g_pad), lambda i, j: (i, 0)),
                pl.BlockSpec((g_pad, block_w), lambda i, j: (0, j)),
            ],
            out_specs=pl.BlockSpec((block_rows, block_w), lambda i, j: (i, j)),
        ),
        compiler_params=_compiler_params(),
    )(x_main, m_main, onehot)

    out2d = out_main.reshape(main_words, H)
    if rem:
        # <= g-1 leftover words: trivial XLA multiply instead of abandoning the
        # lane-dense packing for the whole tensor.
        out_rem = x2d[main_words:] * keep[main_words:, None]
        out2d = jnp.concatenate([out2d, out_rem], axis=0)
    return out2d.reshape(B, T, H)


def _reference(x, key, p):
    B, T, _ = x.shape
    keep = jax.random.bernoulli(key, 1.0 - p, (B * T,)).astype(x.dtype)
    return x * keep.reshape(B, T, 1)


if __name__ == "__main__":
    root = jax.random.PRNGKey(0)

    # Test A: f32, H % 128 != 0 -> packed MXU path, megacore row split.
    ka, kb, kc, kd, ke = jax.random.split(root, 5)
    xa = jax.random.normal(ka, (4, 16, 32), dtype=jnp.float32)
    da = jax.random.fold_in(ka, 1)
    ya = jax.block_until_ready(word_dropout(xa, da, p=0.5, training=True))
    assert ya.shape == xa.shape and ya.dtype == xa.dtype
    assert bool(jnp.allclose(ya, _reference(xa, da, 0.5))), "A: mismatch"
    # Each (b, t) word is either kept verbatim or fully zeroed.
    y2 = ya.reshape(-1, 32)
    x2 = xa.reshape(-1, 32)
    kept = jnp.all(jnp.isclose(y2, x2), axis=-1)
    dropped = jnp.all(y2 == 0.0, axis=-1)
    assert bool(jnp.all(kept | dropped)), "A: mask not constant per word"

    # Test B: bf16, odd H, tiny word count -> row-mask fallback path.
    xb = jax.random.normal(kb, (2, 7, 100), dtype=jnp.bfloat16)
    db = jax.random.fold_in(kb, 1)
    yb = jax.block_until_ready(word_dropout(xb, db, p=0.3, training=True))
    assert bool(jnp.allclose(yb.astype(jnp.float32),
                             _reference(xb, db, 0.3).astype(jnp.float32))), "B: mismatch"

    # Test C: f32, packed path with a words % g != 0 remainder tail.
    xc = jax.random.normal(kc, (4, 17, 48), dtype=jnp.float32)
    dc = jax.random.fold_in(kc, 1)
    yc = jax.block_until_ready(word_dropout(xc, dc, p=0.25, training=True))
    assert bool(jnp.allclose(yc, _reference(xc, dc, 0.25))), "C: mismatch"

    # Test D: bf16 packed MXU path.
    xd = jax.random.normal(kd, (4, 32, 96), dtype=jnp.bfloat16)
    dd = jax.random.fold_in(kd, 1)
    yd = jax.block_until_ready(word_dropout(xd, dd, p=0.4, training=True))
    assert bool(jnp.allclose(yd.astype(jnp.float32),
                             _reference(xd, dd, 0.4).astype(jnp.float32))), "D: mismatch"

    # Test E: H multiple of 128 -> g == 1 lane-tiled path with row split.
    xe = jax.random.normal(ke, (2, 32, 256), dtype=jnp.float32)
    de = jax.random.fold_in(ke, 1)
    ye = jax.block_until_ready(word_dropout(xe, de, p=0.1, training=True))
    assert bool(jnp.allclose(ye, _reference(xe, de, 0.1))), "E: mismatch"

    # Eval mode and p == 0 are identity.
    assert bool(jnp.all(word_dropout(xa, da, p=0.5, training=False) == xa))
    assert bool(jnp.all(word_dropout(xa, da, p=0.0, training=True) == xa))

    print("KERNEL_OK")
</pallas_src>

<mosaic_0001>
module attributes {stable_mosaic.version = 11 : i64} {
  func.func @_packed_kernel(%arg0: i32, %arg1: i32, %arg2: memref<8x128xf32, #tpu.memory_space<vmem>>, %arg3: memref<8x8xf32, #tpu.memory_space<vmem>>, %arg4: memref<8x128xf32, #tpu.memory_space<vmem>>, %arg5: memref<8x128xf32, #tpu.memory_space<vmem>>) attributes {dimension_semantics = [#tpu.dimension_semantics<parallel>, #tpu.dimension_semantics<parallel>], iteration_bounds = array<i64: 2, 1>, scalar_prefetch = 0 : i64, scratch_operands = 0 : i64, tpu.core_type = #tpu.core_type<tc>, window_params = [{transform_indices = @transform_0, window_bounds = array<i64: 8, 128>}, {transform_indices = @transform_1, window_bounds = array<i64: 8, 8>}, {transform_indices = @transform_2, window_bounds = array<i64: 8, 128>}, {transform_indices = @transform_3, window_bounds = array<i64: 8, 128>}]} {
    %c0 = arith.constant 0 : index
    %c0_0 = arith.constant 0 : index
    %0 = vector.load %arg3[%c0, %c0_0] : memref<8x8xf32, #tpu.memory_space<vmem>>, vector<8x8xf32>
    %c0_1 = arith.constant 0 : index
    %c0_2 = arith.constant 0 : index
    %1 = vector.load %arg4[%c0_1, %c0_2] : memref<8x128xf32, #tpu.memory_space<vmem>>, vector<8x128xf32>
    %cst = arith.constant dense<0.000000e+00> : vector<8x128xf32>
    %2 = tpu.matmul %0, %1, %cst {dimension_numbers = #tpu.dot_dimension_numbers<[1], [0], [0], [1], [0, 0, 1, 1], [], []>} : vector<8x8xf32>, vector<8x128xf32>, vector<8x128xf32> -> vector<8x128xf32>
    %c0_3 = arith.constant 0 : index
    %c0_4 = arith.constant 0 : index
    %3 = vector.load %arg2[%c0_3, %c0_4] : memref<8x128xf32, #tpu.memory_space<vmem>>, vector<8x128xf32>
    %4 = arith.mulf %3, %2 : vector<8x128xf32>
    %c0_5 = arith.constant 0 : index
    %c0_6 = arith.constant 0 : index
    %5 = vector.load %arg5[%c0_5, %c0_6] : memref<8x128xf32, #tpu.memory_space<vmem>>, vector<8x128xf32>
    tpu.vector_store %arg5[%c0_5, %c0_6], %4 {strides = array<i32>} : memref<8x128xf32, #tpu.memory_space<vmem>>, vector<8x128xf32>,
    return
  }
  func.func @transform_0(%arg0: i32, %arg1: i32) -> (i32, i32) {
    %c0_i32 = arith.constant 0 : i32
    return %arg0, %arg1 : i32, i32
  }
  func.func @transform_1(%arg0: i32, %arg1: i32) -> (i32, i32) {
    %c0_i32 = arith.constant 0 : i32
    %c0_i32_0 = arith.constant 0 : i32
    return %arg0, %c0_i32 : i32, i32
  }
  func.func @transform_2(%arg0: i32, %arg1: i32) -> (i32, i32) {
    %c0_i32 = arith.constant 0 : i32
    %c0_i32_0 = arith.constant 0 : i32
    return %c0_i32, %arg1 : i32, i32
  }
  func.func @transform_3(%arg0: i32, %arg1: i32) -> (i32, i32) {
    %c0_i32 = arith.constant 0 : i32
    return %arg0, %arg1 : i32, i32
  }
}

</mosaic_0001>

<llo_original>
// kernel: tpu_custom_call.1
$region0: #{tpu_custom_call.1}
  #allocation0 [shape = 'u32[]', space=smem, size = 0x4, offset = 0x4, fixed_abs, tag = 'smem constant byte address 0x4 - core index']
  #allocation1 [shape = 'u32[72,128]{1,0:T(1,128)}', space=vmem, size = 0x9000, scoped, tag = 'internal scratch']
  %s0 = inlined_call_operand.vmem [shape: f32[16,128], index: 0, kind: input, shape index: {}]
  %s1 = inlined_call_operand.vmem [shape: f32[16,8], index: 1, kind: input, shape index: {}]
  %s2 = inlined_call_operand.vmem [shape: f32[8,128], index: 2, kind: input, shape index: {}]
  %s3 = inlined_call_operand.hbm [shape: f32[16,128], index: 3, kind: output, shape index: {}]
  %s4 = sld [smem:[#allocation0]]
  $region45: #{tpu_custom_call.1} parent=0
    _
  %s6 = ssub.s32 1, %s4
  %s7 = scalar_select 0, %s6, %s4
  $region1: #{tpu_custom_call.1} parent=0
    #allocation2 [shape = 'u8[8192]{0}', space=vmem, size = 0x2000, scoped, tag = 'output window, operand 0']
    #allocation3 [shape = 's32[2]{0}', space=sflag, size = 0x8, scoped, tag = 'scoped memory for tpu_custom_call.1']
    %8 = vsyncpa [#allocation3], 0
    %s9 = scalar_lea.sflag [#allocation3], 1
    %10 = vsyncpa %s9, 0
    loop: start=0, step=1, limit=4
    $region2: #{tpu_custom_call.1} parent=1 // loop_pre_header
      _
    $region3: #{tpu_custom_call.1} parent=1 // loop_header
      %s12 = sphi 0, %s16
      %p13 = scmp.ge.s32.totalorder %s12, 4
      %s19 = sphi 0, %s31
      %s20 = sphi 0, %s27
      %s21 = sphi 0, %s19
      %s22 = sphi 0, %s20
      %s23 = sphi 0, %s21
      %s24 = sphi 0, %s22
      %s36 = sphi 0, %s38
      %s39 = sphi 0, %s36
      %s40 = sphi 0, %s39
      %s56 = sphi 0, %s40
      %s62 = sphi 0, %s64
      %s65 = sphi 0, %s62
      %s66 = sphi 0, %s65
      %s82 = sphi 0, %s66
      %s88 = sphi 0, %s90
      %s91 = sphi 0, %s88
      %s92 = sphi 0, %s91
      %s108 = sphi 0, %s92
      %s116 = sphi 0, %s118
      %s119 = sphi 0, %s116
      %s120 = sphi 0, %s119
      %s136 = sphi 0, %s120
    $region4: #{tpu_custom_call.1} parent=1 // loop_header_branch
      %15 = sbr.rel (%p13) target = $region8
    $region5: #{tpu_custom_call.1} parent=1 // loop_body
      %s17 = ssub.s32 %s12, 1
      %s18 = ssub.s32 %s12, 2
      %s25 = sadd.s32 1, %s20
      %p26 = scmp.ge.s32.totalorder %s25, 1
      %s27 = scalar_select %p26, 0, %s25
      %s28 = sadd.s32 1, %s19
      %s29 = scalar_select %p26, %s28, %s19
      %p30 = scmp.ge.s32.totalorder %s29, 2
      %s31 = scalar_select %p30, 0, %s29
      %s32 = ssub.s32 %s19, %s31
      %s33 = ssub.s32 %s20, %s27
      %s34 = sor.u32 %s32, %s33
      %p35 = scmp.eq.s32.totalorder %s34, 0
      %s37 = sadd.s32 %s36, 1
      %s38 = scalar_select %p35, %s36, %s37
      %p41 = pneg %p35
      %p42 = scmp.eq.s32.totalorder %s12, 1
      %p43 = por %p41, %p42
      %p44 = scmp.ne.s32.totalorder %s36, %s39
      %p45 = scmp.eq.s32.totalorder %s12, 0
      %p46 = por %p44, %p45
      %p47 = scmp.ne.s32.totalorder %s36, %s39
      %p48 = scmp.eq.s32.totalorder %s17, 1
      %p49 = por %p47, %p48
      %p50 = scmp.ne.s32.totalorder %s39, %s40
      %p51 = scmp.eq.s32.totalorder %s17, 0
      %p52 = por %p50, %p51
      %p53 = scmp.ne.s32.totalorder %s39, %s40
      %p54 = scmp.eq.s32.totalorder %s18, 1
      %p55 = por %p53, %p54
      %p57 = scmp.ne.s32.totalorder %s40, %s56
      %p58 = scmp.eq.s32.totalorder %s18, 0
      %p59 = por %p57, %p58
      %s60 = ssub.s32 %s19, %s31
      %p61 = scmp.eq.s32.totalorder %s60, 0
      %s63 = sadd.s32 %s62, 1
      %s64 = scalar_select %p61, %s62, %s63
      %p67 = pneg %p61
      %p68 = scmp.eq.s32.totalorder %s12, 1
      %p69 = por %p67, %p68
      %p70 = scmp.ne.s32.totalorder %s62, %s65
      %p71 = scmp.eq.s32.totalorder %s12, 0
      %p72 = por %p70, %p71
      %p73 = scmp.ne.s32.totalorder %s62, %s65
      %p74 = scmp.eq.s32.totalorder %s17, 1
      %p75 = por %p73, %p74
      %p76 = scmp.ne.s32.totalorder %s65, %s66
      %p77 = scmp.eq.s32.totalorder %s17, 0
      %p78 = por %p76, %p77
      %p79 = scmp.ne.s32.totalorder %s65, %s66
      %p80 = scmp.eq.s32.totalorder %s18, 1
      %p81 = por %p79, %p80
      %p83 = scmp.ne.s32.totalorder %s66, %s82
      %p84 = scmp.eq.s32.totalorder %s18, 0
      %p85 = por %p83, %p84
      %s86 = ssub.s32 %s20, %s27
      %p87 = scmp.eq.s32.totalorder %s86, 0
      %s89 = sadd.s32 %s88, 1
      %s90 = scalar_select %p87, %s88, %s89
      %p93 = pneg %p87
      %p94 = scmp.eq.s32.totalorder %s12, 1
      %p95 = por %p93, %p94
      %p96 = scmp.ne.s32.totalorder %s88, %s91
      %p97 = scmp.eq.s32.totalorder %s12, 0
      %p98 = por %p96, %p97
      %p99 = scmp.ne.s32.totalorder %s88, %s91
      %p100 = scmp.eq.s32.totalorder %s17, 1
      %p101 = por %p99, %p100
      %p102 = scmp.ne.s32.totalorder %s91, %s92
      %p103 = scmp.eq.s32.totalorder %s17, 0
      %p104 = por %p102, %p103
      %p105 = scmp.ne.s32.totalorder %s91, %s92
      %p106 = scmp.eq.s32.totalorder %s18, 1
      %p107 = por %p105, %p106
      %p109 = scmp.ne.s32.totalorder %s92, %s108
      %p110 = scmp.eq.s32.totalorder %s18, 0
      %p111 = por %p109, %p110
      %s112 = ssub.s32 %s19, %s31
      %s113 = ssub.s32 %s20, %s27
      %s114 = sor.u32 %s112, %s113
      %p115 = scmp.eq.s32.totalorder %s114, 0
      %s117 = sadd.s32 %s116, 1
      %s118 = scalar_select %p115, %s116, %s117
      %p121 = pneg %p115
      %p122 = scmp.eq.s32.totalorder %s12, 1
      %p123 = por %p121, %p122
      %p124 = scmp.ne.s32.totalorder %s116, %s119
      %p125 = scmp.eq.s32.totalorder %s12, 0
      %p126 = por %p124, %p125
      %p127 = scmp.ne.s32.totalorder %s116, %s119
      %p128 = scmp.eq.s32.totalorder %s17, 1
      %p129 = por %p127, %p128
      %p130 = scmp.ne.s32.totalorder %s119, %s120
      %p131 = scmp.eq.s32.totalorder %s17, 0
      %p132 = por %p130, %p131
      %p133 = scmp.ne.s32.totalorder %s119, %s120
      %p134 = scmp.eq.s32.totalorder %s18, 1
      %p135 = por %p133, %p134
      %p137 = scmp.ne.s32.totalorder %s120, %s136
      %p138 = scmp.eq.s32.totalorder %s18, 0
      %p139 = por %p137, %p138
      %p140 = scmp.le.s32.totalorder 1, %s12
      %p141 = scmp.lt.s32.totalorder %s12, 3
      %p142 = pnand %p140, %p141
      %p143 = pneg %p142
      // Predicated region
      $region9: #{tpu_custom_call.1} parent=5 // pred_check
        _
      $region10: #{tpu_custom_call.1} parent=5 // pred_check_branch
        %145 = sbr.rel (%p142) target = $region12
      $region11: #{tpu_custom_call.1} parent=5 // pred_region
        %s146 = ssub.s32 %s12, 1
        // Predicated region
        $region13: #{tpu_custom_call.1} parent=11 // pred_check
          %p147 = pneg %p104
        $region14: #{tpu_custom_call.1} parent=11 // pred_check_branch
          %149 = sbr.rel (%p147) target = $region16
        $region15: #{tpu_custom_call.1} parent=11 // pred_region
          %p150 = scmp.lt.s32.totalorder %s22, 0
          %s151 = scalar_select %p150, %s22, 0
          %s152 = smul.addr %s151, 8
          %s153 = scalar_lea.vmem %s2, %s152
        $region16: #{tpu_custom_call.1} parent=11 // pred_fallthru
          _
      $region12: #{tpu_custom_call.1} parent=5 // pred_fallthru
        _
      %p154 = scmp.lt.s32.totalorder %s12, 2
      // Predicated region
      $region17: #{tpu_custom_call.1} parent=5 // pred_check
        %p155 = pneg %p154
      $region18: #{tpu_custom_call.1} parent=5 // pred_check_branch
        %157 = sbr.rel (%p155) target = $region20
      $region19: #{tpu_custom_call.1} parent=5 // pred_region
        // Predicated region
        $region21: #{tpu_custom_call.1} parent=19 // pred_check
          %p158 = pneg %p46
        $region22: #{tpu_custom_call.1} parent=19 // pred_check_branch
          %160 = sbr.rel (%p158) target = $region24
        $region23: #{tpu_custom_call.1} parent=19 // pred_region
          %p161 = scmp.lt.s32.totalorder %s19, 1
          %s162 = scalar_select %p161, %s19, 1
          %p163 = scmp.lt.s32.totalorder %s20, 0
          %s164 = scalar_select %p163, %s20, 0
          %s165 = sadd.s32 %s164, %s162
          %s166 = smul.addr %s165, 8
          %s167 = scalar_lea.vmem %s0, %s166
        $region24: #{tpu_custom_call.1} parent=19 // pred_fallthru
          _
        // Predicated region
        $region25: #{tpu_custom_call.1} parent=19 // pred_check
          %p168 = pneg %p72
        $region26: #{tpu_custom_call.1} parent=19 // pred_check_branch
          %170 = sbr.rel (%p168) target = $region28
        $region27: #{tpu_custom_call.1} parent=19 // pred_region
          %p171 = scmp.lt.s32.totalorder %s19, 1
          %s172 = scalar_select %p171, %s19, 1
          %s173 = smul.addr %s172, 8
          %s174 = scalar_lea.vmem %s1, %s173
        $region28: #{tpu_custom_call.1} parent=19 // pred_fallthru
          _
      $region20: #{tpu_custom_call.1} parent=5 // pred_fallthru
        _
      %p175 = scmp.le.s32.totalorder 1, %s12
      %p176 = scmp.lt.s32.totalorder %s12, 3
      %p177 = pnand %p175, %p176
      %p178 = pneg %p177
      // Predicated region
      $region29: #{tpu_custom_call.1} parent=5 // pred_check
        _
      $region30: #{tpu_custom_call.1} parent=5 // pred_check_branch
        %180 = sbr.rel (%p177) target = $region32
      $region31: #{tpu_custom_call.1} parent=5 // pred_region
        %s181 = ssub.s32 %s12, 1
        %p182 = scmp.lt.s32.totalorder %s21, 1
        %s183 = scalar_select %p182, %s21, 1
        %p184 = scmp.lt.s32.totalorder %s22, 0
        %s185 = scalar_select %p184, %s22, 0
        %s186 = sadd.s32 %s185, %s183
        %s187 = smul.addr %s186, 8
        %s188 = scalar_lea.vmem %s0, %s187
        %p189 = pneg %p52
        %p190 = pneg %p49
        %p191 = scmp.lt.s32.totalorder %s21, 1
        %s192 = scalar_select %p191, %s21, 1
        %s193 = smul.addr %s192, 8
        %s194 = scalar_lea.vmem %s1, %s193
        %p195 = pneg %p78
        %p196 = pneg %p75
        %p197 = scmp.lt.s32.totalorder %s22, 0
        %s198 = scalar_select %p197, %s22, 0
        %s199 = smul.addr %s198, 8
        %s200 = scalar_lea.vmem %s2, %s199
        %p201 = pneg %p104
        %p202 = pneg %p101
        %p203 = pneg %p132
        %p204 = pneg %p129
        %s205 = sand.u32 %s119, 1
        %s206 = scalar_lea.sflag [#allocation3], %s205
        %s207 = sand.u32 %s119, 1
        %s208 = smul.addr %s207, 8
        %s209 = scalar_lea.vmem [#allocation2], %s208
        %p210 = scmp.lt.s32.totalorder %s21, 1
        %s211 = scalar_select %p210, %s21, 1
        %p212 = scmp.lt.s32.totalorder %s22, 0
        %s213 = scalar_select %p212, %s22, 0
        %s214 = sadd.s32 %s213, %s211
        %s215 = smul.addr %s214, 8
        %s216 = scalar_lea.vmem %s0, %s215
        %p217 = scmp.lt.s32.totalorder %s21, 1
        %s218 = scalar_select %p217, %s21, 1
        %s219 = smul.addr %s218, 8
        %s220 = scalar_lea.vmem %s1, %s219
        %p221 = scmp.lt.s32.totalorder %s22, 0
        %s222 = scalar_select %p221, %s22, 0
        %s223 = smul.addr %s222, 8
        %s224 = scalar_lea.vmem %s2, %s223
        %v225 = vld [vmem:[%s220] sm:$0xff]
        %v226 = vld [vmem:[%s224] sm:$0xff]
        %vm227 = vcmask 64512
        %v229 = vsel %vm227, %v225, 0
        %231 = vmatpush.msra.mxu0 0.0
        %232 = vmatpush.msra.mxu0 0.0
        %233 = vmatpush.msra.mxu0 0.0
        %234 = vmatpush.msra.mxu0 0.0
        %235 = vmatpush.msra.mxu0 0.0
        %236 = vmatpush.msra.mxu0 0.0
        %237 = vmatpush.msra.mxu0 0.0
        %238 = vmatpush.msra.mxu0 0.0
        %239 = vmatpush.msra.mxu0 0.0
        %240 = vmatpush.msra.mxu0 0.0
        %241 = vmatpush.msra.mxu0 0.0
        %242 = vmatpush.msra.mxu0 0.0
        %243 = vmatpush.msra.mxu0 0.0
        %244 = vmatpush.msra.mxu0 0.0
        %245 = vmatpush.msra.mxu0 0.0
        %246 = vmatpush.msra.mxu0 %v226
        %247 = vmatmul.f32.gmra.mxu0 %v229
        %v248 = vpop.f32.mrf.mxu0
        %v249 = vadd.f32 0.0, %v248
        %250 = vdwg.mxu0
        %v251 = vld [vmem:[%s216] sm:$0xff]
        %v252 = vmul.f32 %v251, %v249
        %253 = vst [vmem:[%s209] sm:$0xff] %v252
        %s254 = sand.u32 %s119, 1
        %s255 = scalar_lea.sflag [#allocation3], %s254
        %s256 = sand.u32 %s119, 1
        %s257 = smul.addr %s256, 8
        %s258 = scalar_lea.vmem [#allocation2], %s257
        // Predicated region
        $region33: #{tpu_custom_call.1} parent=31 // pred_check
          %p259 = pneg %p129
        $region34: #{tpu_custom_call.1} parent=31 // pred_check_branch
          %261 = sbr.rel (%p259) target = $region36
        $region35: #{tpu_custom_call.1} parent=31 // pred_region
          %263 = vsyncadd %s255, 0
          %s264 = sadd.s32 %s22, %s21
          %s265 = smul.addr %s264, 8
          %s266 = scalar_lea.hbm %s3, %s265
          %s268 = sshll.u32 %s258, 4
          %s269 = int_to_ptr.vmem [resolvable:$true] %s268
          %s270 = sshll.u32 %s266, 4
          %s271 = int_to_ptr.hbm [resolvable:$true] %s270
          %273 = dma.vmem_to_hbm [thread:$0]  %s269, 128, %s271, %s255
        $region36: #{tpu_custom_call.1} parent=31 // pred_fallthru
          _
      $region32: #{tpu_custom_call.1} parent=5 // pred_fallthru
        _
      %p274 = scmp.le.s32.totalorder 2, %s12
      // Predicated region
      $region37: #{tpu_custom_call.1} parent=5 // pred_check
        %p275 = pneg %p274
      $region38: #{tpu_custom_call.1} parent=5 // pred_check_branch
        %277 = sbr.rel (%p275) target = $region40
      $region39: #{tpu_custom_call.1} parent=5 // pred_region
        %s278 = ssub.s32 %s12, 2
        // Predicated region
        $region41: #{tpu_custom_call.1} parent=39 // pred_check
          %p279 = pneg %p135
        $region42: #{tpu_custom_call.1} parent=39 // pred_check_branch
          %281 = sbr.rel (%p279) target = $region44
        $region43: #{tpu_custom_call.1} parent=39 // pred_region
          %s282 = sand.u32 %s120, 1
          %s283 = scalar_lea.sflag [#allocation3], %s282
          %s284 = sand.u32 %s120, 1
          %s285 = smul.addr %s284, 8
          %s286 = scalar_lea.vmem [#allocation2], %s285
          %288 = dma.done %s283, 128
        $region44: #{tpu_custom_call.1} parent=39 // pred_fallthru
          _
      $region40: #{tpu_custom_call.1} parent=5 // pred_fallthru
        _
    $region6: #{tpu_custom_call.1} parent=1 // loop_footer
      %s16 = sadd.s32 1, %s12
    $region7: #{tpu_custom_call.1} parent=1 // loop_footer_branch
      %11 = sbr.rel target = $region3
    $region8: #{tpu_custom_call.1} parent=1 // loop_exit
      _
    %289 = vsyncpa [#allocation3], 1
    %s290 = scalar_lea.sflag [#allocation3], 1
    %291 = vsyncpa %s290, 1

</llo_original>
